<compile_context>
chip_gen: v7x
topology: tpu7x:2x2x1
jax: 0.10.0
libtpu: 0.0.40
codegen_flags: <defaults>
</compile_context>

<pallas_src>
import functools

import jax
import jax.numpy as jnp
from jax.experimental import pallas as pl
from jax.experimental.pallas import tpu as pltpu


def _row_pool_kernel(x_ref, p_ref, o_ref, *, scale):
    # x_ref: (TR, K) input rows, p_ref: (K, M) 0/1 pooling matrix, o_ref: (TR, M).
    acc = jnp.dot(x_ref[...], p_ref[...], preferred_element_type=jnp.float32)
    o_ref[...] = (acc * scale).astype(o_ref.dtype)


def _vmem_config():
    """(per-step VMEM budget, vmem_limit_bytes) tuned per TPU generation."""
    try:
        cap = int(pltpu.get_tpu_info().vmem_capacity_bytes)
    except Exception:
        cap = 64 << 20  # conservative: assume v7x-class 64 MiB per-TC VMEM
    if cap >= (96 << 20):          # v5e / v6e: 128 MiB physical VMEM
        return 64 << 20, 100 << 20
    return 36 << 20, 48 << 20      # v7x: 64 MiB physical VMEM


def _pick_row_tile(R, K, M, itemsize, budget, p_buffers):
    """Largest row tile (multiple of 8) whose pipelined footprint fits the budget."""
    def footprint(tr):
        return (2 * tr * K * itemsize            # input double buffer
                + p_buffers * K * M * itemsize   # pooling-matrix buffer(s)
                + 2 * tr * M * itemsize          # output double buffer
                + tr * M * 4)                    # f32 matmul accumulator

    if R <= 8:
        return R                                 # full (tiny) row axis in one block
    cap = (R // 8) * 8
    cands = [cap] + [c for c in (8192, 4096, 2048, 1024, 512, 256, 128, 64, 32, 16, 8)
                     if c < cap]
    tr = 8
    for c in cands:
        if footprint(c) <= budget:
            tr = c
            break
    # v7x has 2 TensorCores; only "parallel" grid axes with >=2 steps get sharded.
    while tr > 8 and pl.cdiv(R, tr) < 2:
        tr = max(8, (tr // 2 // 8) * 8)
    return tr


def _row_pool_call(R, K, M, dtype, tr, scale, vmem_limit, single_buffer_p):
    kernel = functools.partial(_row_pool_kernel, scale=scale)
    p_kwargs = {"pipeline_mode": pl.Buffered(1)} if single_buffer_p else {}
    return pl.pallas_call(
        kernel,
        out_shape=jax.ShapeDtypeStruct((R, M), dtype),
        grid_spec=pltpu.PrefetchScalarGridSpec(
            num_scalar_prefetch=0,
            grid=(pl.cdiv(R, tr),),
            in_specs=[
                pl.BlockSpec((tr, K), lambda r: (r, 0)),
                # Constant index_map: fetched once; single-buffered to free VMEM.
                pl.BlockSpec((K, M), lambda r: (0, 0), **p_kwargs),
            ],
            out_specs=pl.BlockSpec((tr, M), lambda r: (r, 0)),
        ),
        compiler_params=pltpu.CompilerParams(
            dimension_semantics=("parallel",),
            vmem_limit_bytes=vmem_limit),
    )


def _row_pool(x2d, p, scale, budget, vmem_limit):
    """out[r, m] = scale * sum_k x2d[r, k] * p[k, m], tiled over rows."""
    R, K = x2d.shape
    M = p.shape[1]
    itemsize = jnp.dtype(x2d.dtype).itemsize
    tr = _pick_row_tile(R, K, M, itemsize, budget, p_buffers=1)
    try:
        return _row_pool_call(R, K, M, x2d.dtype, tr, scale, vmem_limit, True)(x2d, p)
    except Exception:
        # pl.Buffered(1) unsupported on this jax version -> default double buffering.
        tr = _pick_row_tile(R, K, M, itemsize, budget, p_buffers=2)
        return _row_pool_call(R, K, M, x2d.dtype, tr, scale, vmem_limit, False)(x2d, p)


def adaptive_avg_pool2d_pallas(x, output_size):
    """Equivalent of MyAdaptiveAvgPool2dEfficient.forward for NCHW input."""
    if isinstance(output_size, int):
        output_size = (output_size, output_size)
    N, C, H, W = x.shape
    out_H, out_W = output_size
    if H % out_H != 0 or W % out_W != 0:
        raise ValueError(
            "For this efficient implementation, H and W must be divisible by "
            "out_H and out_W.")
    kh, kw = H // out_H, W // out_W
    HW, OHW = H * W, out_H * out_W

    # v7x MXU has no integer path; route integer/bool inputs through f32.
    if not jnp.issubdtype(x.dtype, jnp.floating):
        x = x.astype(jnp.float32)
    dtype = x.dtype
    itemsize = jnp.dtype(dtype).itemsize

    budget, vmem_limit = _vmem_config()

    # Fused path only when the fused pooling matrix is small: avoids both the
    # O(HW*OHW) VMEM cost and the OHW-fold FLOP inflation for large outputs.
    use_fused = (OHW <= 128) and (2 * HW * OHW * itemsize <= budget // 4)

    # TODO(synk): for small pooling windows (OHW < 128) the output block is
    # lane-sparse (masked vst); a channel-grouped lane-dense store layout could
    # recover up to ~4x on the store path but costs an in-kernel relayout.
    if use_fused:
        # Fused 0/1 pooling matrix P[h*W+w, oh*out_W+ow] = 1 iff window membership.
        ph = ((jnp.arange(H)[:, None] // kh) == jnp.arange(out_H)[None, :])
        pw = ((jnp.arange(W)[:, None] // kw) == jnp.arange(out_W)[None, :])
        p = jnp.kron(ph.astype(dtype), pw.astype(dtype))          # (HW, OHW)
        x_flat = x.reshape(N * C, HW)                             # free layout reshape
        out_flat = _row_pool(x_flat, p, 1.0 / float(kh * kw), budget, vmem_limit)
        return out_flat.reshape(N, C, out_H, out_W)

    # Factorized path: pool along W, then along H, as two row-wise matmuls.
    pw = ((jnp.arange(W)[:, None] // kw) == jnp.arange(out_W)[None, :]).astype(dtype)
    y1 = _row_pool(x.reshape(N * C * H, W), pw, 1.0 / float(kw),
                   budget, vmem_limit)                            # (N*C*H, out_W)
    p2 = jnp.tile(jnp.eye(out_W, dtype=dtype), (kh, 1))           # (kh*out_W, out_W)
    y2 = _row_pool(y1.reshape(N * C * out_H, kh * out_W), p2, 1.0 / float(kh),
                   budget, vmem_limit)                            # (N*C*out_H, out_W)
    return y2.reshape(N, C, out_H, out_W)


def adaptive_avg_pool2d_ref(x, output_size):
    """Pure-JAX reference matching the PyTorch module semantics."""
    if isinstance(output_size, int):
        output_size = (output_size, output_size)
    N, C, H, W = x.shape
    out_H, out_W = output_size
    kh, kw = H // out_H, W // out_W
    xr = x.reshape(N, C, out_H, kh, out_W, kw)
    return xr.mean(axis=(3, 5))


if __name__ == "__main__":
    key = jax.random.PRNGKey(0)

    # Demo 1: fused single-matmul path (small OHW).
    N, C, H, W = 2, 4, 16, 16
    x = jax.random.normal(key, (N, C, H, W), dtype=jnp.float32)
    out = jax.block_until_ready(adaptive_avg_pool2d_pallas(x, 4))
    ref = adaptive_avg_pool2d_ref(x, 4)
    assert out.shape == (N, C, 4, 4), out.shape
    assert jnp.allclose(out, ref, atol=1e-5, rtol=1e-5), "fused path mismatch"

    # Demo 2: factorized two-matmul path (OHW > 128 triggers the fallback).
    x2 = jax.random.normal(jax.random.PRNGKey(0), (1, 2, 32, 32), dtype=jnp.float32)
    out2 = jax.block_until_ready(adaptive_avg_pool2d_pallas(x2, 16))
    ref2 = adaptive_avg_pool2d_ref(x2, 16)
    assert out2.shape == (1, 2, 16, 16), out2.shape
    assert jnp.allclose(out2, ref2, atol=1e-5, rtol=1e-5), "factorized path mismatch"

    print("KERNEL_OK")
</pallas_src>

<mosaic_0001>
module attributes {stable_mosaic.version = 11 : i64} {
  func.func @_row_pool_kernel(%arg0: i32, %arg1: memref<8x256xf32, #tpu.memory_space<vmem>>, %arg2: memref<256x16xf32, #tpu.memory_space<vmem>>, %arg3: memref<8x16xf32, #tpu.memory_space<vmem>>) attributes {dimension_semantics = [#tpu.dimension_semantics<parallel>], iteration_bounds = array<i64: 1>, scalar_prefetch = 0 : i64, scratch_operands = 0 : i64, tpu.core_type = #tpu.core_type<tc>, window_params = [{transform_indices = @transform_0, window_bounds = array<i64: 8, 256>}, {pipeline_mode = #tpu.pipeline_mode<synchronous>, transform_indices = @transform_1, window_bounds = array<i64: 256, 16>}, {transform_indices = @transform_2, window_bounds = array<i64: 8, 16>}]} {
    %c0 = arith.constant 0 : index
    %c0_0 = arith.constant 0 : index
    %0 = vector.load %arg1[%c0, %c0_0] : memref<8x256xf32, #tpu.memory_space<vmem>>, vector<8x256xf32>
    %c0_1 = arith.constant 0 : index
    %c0_2 = arith.constant 0 : index
    %1 = vector.load %arg2[%c0_1, %c0_2] : memref<256x16xf32, #tpu.memory_space<vmem>>, vector<256x16xf32>
    %cst = arith.constant dense<0.000000e+00> : vector<8x16xf32>
    %2 = tpu.matmul %0, %1, %cst {dimension_numbers = #tpu.dot_dimension_numbers<[1], [0], [0], [1], [0, 0, 1, 1], [], []>} : vector<8x256xf32>, vector<256x16xf32>, vector<8x16xf32> -> vector<8x16xf32>
    %cst_3 = arith.constant 6.250000e-02 : f32
    %3 = vector.broadcast %cst_3 : f32 to vector<8x16xf32>
    %4 = arith.mulf %2, %3 : vector<8x16xf32>
    %c0_4 = arith.constant 0 : index
    %c0_5 = arith.constant 0 : index
    %5 = vector.load %arg3[%c0_4, %c0_5] : memref<8x16xf32, #tpu.memory_space<vmem>>, vector<8x16xf32>
    tpu.vector_store %arg3[%c0_4, %c0_5], %4 {strides = array<i32>} : memref<8x16xf32, #tpu.memory_space<vmem>>, vector<8x16xf32>,
    return
  }
  func.func @transform_0(%arg0: i32) -> (i32, i32) {
    %c0_i32 = arith.constant 0 : i32
    %c0_i32_0 = arith.constant 0 : i32
    return %arg0, %c0_i32 : i32, i32
  }
  func.func @transform_1(%arg0: i32) -> (i32, i32) {
    %c0_i32 = arith.constant 0 : i32
    %c0_i32_0 = arith.constant 0 : i32
    %c0_i32_1 = arith.constant 0 : i32
    return %c0_i32, %c0_i32_0 : i32, i32
  }
  func.func @transform_2(%arg0: i32) -> (i32, i32) {
    %c0_i32 = arith.constant 0 : i32
    %c0_i32_0 = arith.constant 0 : i32
    return %arg0, %c0_i32 : i32, i32
  }
}

module attributes {stable_mosaic.version = 11 : i64} {
  func.func @_row_pool_kernel(%arg0: i32, %arg1: memref<8x256xf32, #tpu.memory_space<vmem>>, %arg2: memref<256x16xf32, #tpu.memory_space<vmem>>, %arg3: memref<8x16xf32, #tpu.memory_space<vmem>>) attributes {dimension_semantics = [#tpu.dimension_semantics<parallel>], iteration_bounds = array<i64: 1>, scalar_prefetch = 0 : i64, scratch_operands = 0 : i64, tpu.core_type = #tpu.core_type<tc>, window_params = [{transform_indices = @transform_0, window_bounds = array<i64: 8, 256>}, {pipeline_mode = #tpu.pipeline_mode<synchronous>, transform_indices = @transform_1, window_bounds = array<i64: 256, 16>}, {transform_indices = @transform_2, window_bounds = array<i64: 8, 16>}]} {
    %c0 = arith.constant 0 : index
    %c0_0 = arith.constant 0 : index
    %0 = vector.load %arg1[%c0, %c0_0] : memref<8x256xf32, #tpu.memory_space<vmem>>, vector<8x256xf32>
    %c0_1 = arith.constant 0 : index
    %c0_2 = arith.constant 0 : index
    %1 = vector.load %arg2[%c0_1, %c0_2] : memref<256x16xf32, #tpu.memory_space<vmem>>, vector<256x16xf32>
    %cst = arith.constant dense<0.000000e+00> : vector<8x16xf32>
    %2 = tpu.matmul %0, %1, %cst {dimension_numbers = #tpu.dot_dimension_numbers<[1], [0], [0], [1], [0, 0, 1, 1], [], []>} : vector<8x256xf32>, vector<256x16xf32>, vector<8x16xf32> -> vector<8x16xf32>
    %cst_3 = arith.constant 6.250000e-02 : f32
    %3 = vector.broadcast %cst_3 : f32 to vector<8x16xf32>
    %4 = arith.mulf %2, %3 : vector<8x16xf32>
    %c0_4 = arith.constant 0 : index
    %c0_5 = arith.constant 0 : index
    %5 = vector.load %arg3[%c0_4, %c0_5] : memref<8x16xf32, #tpu.memory_space<vmem>>, vector<8x16xf32>
    tpu.vector_store %arg3[%c0_4, %c0_5], %4 {strides = array<i32>} : memref<8x16xf32, #tpu.memory_space<vmem>>, vector<8x16xf32>,
    return
  }
  func.func @transform_0(%arg0: i32) -> (i32, i32) {
    %c0_i32 = arith.constant 0 : i32
    %c0_i32_0 = arith.constant 0 : i32
    return %arg0, %c0_i32 : i32, i32
  }
  func.func @transform_1(%arg0: i32) -> (i32, i32) {
    %c0_i32 = arith.constant 0 : i32
    %c0_i32_0 = arith.constant 0 : i32
    %c0_i32_1 = arith.constant 0 : i32
    return %c0_i32, %c0_i32_0 : i32, i32
  }
  func.func @transform_2(%arg0: i32) -> (i32, i32) {
    %c0_i32 = arith.constant 0 : i32
    %c0_i32_0 = arith.constant 0 : i32
    return %arg0, %c0_i32 : i32, i32
  }
}

</mosaic_0001>

<llo_original>
// kernel: tpu_custom_call.1
$region0: #{tpu_custom_call.1}
  #allocation0 [shape = 'u32[]', space=smem, size = 0x4, offset = 0x4, fixed_abs, tag = 'smem constant byte address 0x4 - core index']
  #allocation1 [shape = 'u32[144,128]{1,0:T(1,128)}', space=vmem, size = 0x12000, scoped, tag = 'internal scratch']
  %s0 = inlined_call_operand.vmem [shape: f32[8,256], index: 0, kind: input, shape index: {}]
  %s1 = inlined_call_operand.vmem [shape: f32[256,16], index: 1, kind: input, shape index: {}]
  %s2 = inlined_call_operand.hbm [shape: f32[8,16], index: 2, kind: output, shape index: {}]
  %s3 = sld [smem:[#allocation0]]
  $region18: #{tpu_custom_call.1} parent=0
    _
  %s5 = ssub.s32 1, %s3
  %s6 = scalar_select 0, %s5, %s3
  $region1: #{tpu_custom_call.1} parent=0
    #allocation2 [shape = 'u8[4096]{0}', space=vmem, size = 0x1000, scoped, tag = 'output window, operand 0, single buffered']
    #allocation3 [shape = 's32[1]{0}', space=sflag, size = 0x4, scoped, tag = 'scoped memory for tpu_custom_call.1']
    %7 = vsyncpa [#allocation3], 0
    // Predicated region
    $region2: #{tpu_custom_call.1} parent=1 // pred_check
      _
    $region3: #{tpu_custom_call.1} parent=1 // pred_check_branch
      %9 = sbr.rel (0) target = $region5
    $region4: #{tpu_custom_call.1} parent=1 // pred_region
      _
    $region5: #{tpu_custom_call.1} parent=1 // pred_fallthru
      _
    // Predicated region
    $region6: #{tpu_custom_call.1} parent=1 // pred_check
      _
    $region7: #{tpu_custom_call.1} parent=1 // pred_check_branch
      %11 = sbr.rel (0) target = $region9
    $region8: #{tpu_custom_call.1} parent=1 // pred_region
      _
    $region9: #{tpu_custom_call.1} parent=1 // pred_fallthru
      _
    %v12 = vld [vmem:[%s0] sm:$0xff]
    %v13 = vld [vmem:[%s0 + $0x8] sm:$0xff]
    %v14 = vld [vmem:[%s1] sm:$0xff]
    %v15 = vld [vmem:[%s1 + $0x8] sm:$0xff]
    %v16 = vld [vmem:[%s1 + $0x10] sm:$0xff]
    %v17 = vld [vmem:[%s1 + $0x18] sm:$0xff]
    %v18 = vld [vmem:[%s1 + $0x20] sm:$0xff]
    %v19 = vld [vmem:[%s1 + $0x28] sm:$0xff]
    %v20 = vld [vmem:[%s1 + $0x30] sm:$0xff]
    %v21 = vld [vmem:[%s1 + $0x38] sm:$0xff]
    %v22 = vld [vmem:[%s1 + $0x40] sm:$0xff]
    %v23 = vld [vmem:[%s1 + $0x48] sm:$0xff]
    %v24 = vld [vmem:[%s1 + $0x50] sm:$0xff]
    %v25 = vld [vmem:[%s1 + $0x58] sm:$0xff]
    %v26 = vld [vmem:[%s1 + $0x60] sm:$0xff]
    %v27 = vld [vmem:[%s1 + $0x68] sm:$0xff]
    %v28 = vld [vmem:[%s1 + $0x70] sm:$0xff]
    %v29 = vld [vmem:[%s1 + $0x78] sm:$0xff]
    %v30 = vld [vmem:[%s1 + $0x80] sm:$0xff]
    %v31 = vld [vmem:[%s1 + $0x88] sm:$0xff]
    %v32 = vld [vmem:[%s1 + $0x90] sm:$0xff]
    %v33 = vld [vmem:[%s1 + $0x98] sm:$0xff]
    %v34 = vld [vmem:[%s1 + $0xa0] sm:$0xff]
    %v35 = vld [vmem:[%s1 + $0xa8] sm:$0xff]
    %v36 = vld [vmem:[%s1 + $0xb0] sm:$0xff]
    %v37 = vld [vmem:[%s1 + $0xb8] sm:$0xff]
    %v38 = vld [vmem:[%s1 + $0xc0] sm:$0xff]
    %v39 = vld [vmem:[%s1 + $0xc8] sm:$0xff]
    %v40 = vld [vmem:[%s1 + $0xd0] sm:$0xff]
    %v41 = vld [vmem:[%s1 + $0xd8] sm:$0xff]
    %v42 = vld [vmem:[%s1 + $0xe0] sm:$0xff]
    %v43 = vld [vmem:[%s1 + $0xe8] sm:$0xff]
    %v44 = vld [vmem:[%s1 + $0xf0] sm:$0xff]
    %v45 = vld [vmem:[%s1 + $0xf8] sm:$0xff]
    %46 = vmatprep.subr.mxu0 0.0
    %47 = vmatpush1.msra.mxu0 %v14
    %48 = vmatprep.subr.mxu0 0.0
    %49 = vmatpush1.msra.mxu0 %v15
    %50 = vmatprep.subr.mxu0 0.0
    %51 = vmatpush1.msra.mxu0 %v16
    %52 = vmatprep.subr.mxu0 0.0
    %53 = vmatpush1.msra.mxu0 %v17
    %54 = vmatprep.subr.mxu0 0.0
    %55 = vmatpush1.msra.mxu0 %v18
    %56 = vmatprep.subr.mxu0 0.0
    %57 = vmatpush1.msra.mxu0 %v19
    %58 = vmatprep.subr.mxu0 0.0
    %59 = vmatpush1.msra.mxu0 %v20
    %60 = vmatprep.subr.mxu0 0.0
    %61 = vmatpush1.msra.mxu0 %v21
    %62 = vmatprep.subr.mxu0 0.0
    %63 = vmatpush1.msra.mxu0 %v22
    %64 = vmatprep.subr.mxu0 0.0
    %65 = vmatpush1.msra.mxu0 %v23
    %66 = vmatprep.subr.mxu0 0.0
    %67 = vmatpush1.msra.mxu0 %v24
    %68 = vmatprep.subr.mxu0 0.0
    %69 = vmatpush1.msra.mxu0 %v25
    %70 = vmatprep.subr.mxu0 0.0
    %71 = vmatpush1.msra.mxu0 %v26
    %72 = vmatprep.subr.mxu0 0.0
    %73 = vmatpush1.msra.mxu0 %v27
    %74 = vmatprep.subr.mxu0 0.0
    %75 = vmatpush1.msra.mxu0 %v28
    %76 = vmatprep.subr.mxu0 0.0
    %77 = vmatpush1.msra.mxu0 %v29
    %78 = vmatprep.subr.mxu0 0.0
    %79 = vmatpush1.msra.mxu0 %v30
    %80 = vmatprep.subr.mxu0 0.0
    %81 = vmatpush1.msra.mxu0 %v31
    %82 = vmatprep.subr.mxu0 0.0
    %83 = vmatpush1.msra.mxu0 %v32
    %84 = vmatprep.subr.mxu0 0.0
    %85 = vmatpush1.msra.mxu0 %v33
    %86 = vmatprep.subr.mxu0 0.0
    %87 = vmatpush1.msra.mxu0 %v34
    %88 = vmatprep.subr.mxu0 0.0
    %89 = vmatpush1.msra.mxu0 %v35
    %90 = vmatprep.subr.mxu0 0.0
    %91 = vmatpush1.msra.mxu0 %v36
    %92 = vmatprep.subr.mxu0 0.0
    %93 = vmatpush1.msra.mxu0 %v37
    %94 = vmatprep.subr.mxu0 0.0
    %95 = vmatpush1.msra.mxu0 %v38
    %96 = vmatprep.subr.mxu0 0.0
    %97 = vmatpush1.msra.mxu0 %v39
    %98 = vmatprep.subr.mxu0 0.0
    %99 = vmatpush1.msra.mxu0 %v40
    %100 = vmatprep.subr.mxu0 0.0
    %101 = vmatpush1.msra.mxu0 %v41
    %102 = vmatprep.subr.mxu0 0.0
    %103 = vmatpush1.msra.mxu0 %v42
    %104 = vmatprep.subr.mxu0 0.0
    %105 = vmatpush1.msra.mxu0 %v43
    %106 = vmatprep.subr.mxu0 0.0
    %107 = vmatpush1.msra.mxu0 %v44
    %108 = vmatprep.subr.mxu0 0.0
    %109 = vmatpush1.msra.mxu0 %v45
    %110 = vmatprep.mubr.f32.mxu0 %v13
    %111 = vmatmul.mubr.f32.gmra.mrb[0].mxu0 %v12
    %v112 = vpop.f32.mrb[0].mxu0
    %v113 = vadd.f32 0.0, %v112
    %v114 = vpop.f32.mrb[0].mxu0
    %115 = vdwg.mxu0
    %v116 = vmul.f32 %v113, 0.0625
    %vm117 = vcmask 130048
    %118 = vst.msk [vmem:[#allocation2] sm:$0xff] %vm117, %v116
    // Predicated region
    $region10: #{tpu_custom_call.1} parent=1 // pred_check
      _
    $region11: #{tpu_custom_call.1} parent=1 // pred_check_branch
      %120 = sbr.rel (0) target = $region13
    $region12: #{tpu_custom_call.1} parent=1 // pred_region
      %s122 = ssub.s32 128, 128
      %123 = vsyncadd [#allocation3], %s122
      %s125 = sshll.u32 [#allocation2], 4
      %s126 = int_to_ptr.vmem [resolvable:$true] %s125
      %128 = dma.vmem_to_hbm [thread:$0]  %s126, 128, %s2, [#allocation3]
    $region13: #{tpu_custom_call.1} parent=1 // pred_fallthru
      _
    // Predicated region
    $region14: #{tpu_custom_call.1} parent=1 // pred_check
      _
    $region15: #{tpu_custom_call.1} parent=1 // pred_check_branch
      %130 = sbr.rel (0) target = $region17
    $region16: #{tpu_custom_call.1} parent=1 // pred_region
      %131 = dma.done [#allocation3], 128
    $region17: #{tpu_custom_call.1} parent=1 // pred_fallthru
      _
    %132 = vsyncpa [#allocation3], 1

// kernel: tpu_custom_call.1
$region0: #{tpu_custom_call.1}
  #allocation0 [shape = 'u32[]', space=smem, size = 0x4, offset = 0x4, fixed_abs, tag = 'smem constant byte address 0x4 - core index']
  #allocation1 [shape = 'u32[144,128]{1,0:T(1,128)}', space=vmem, size = 0x12000, scoped, tag = 'internal scratch']
  %s0 = inlined_call_operand.vmem [shape: f32[8,256], index: 0, kind: input, shape index: {}]
  %s1 = inlined_call_operand.vmem [shape: f32[256,16], index: 1, kind: input, shape index: {}]
  %s2 = inlined_call_operand.hbm [shape: f32[8,16], index: 2, kind: output, shape index: {}]
  %s3 = sld [smem:[#allocation0]]
  $region18: #{tpu_custom_call.1} parent=0
    _
  %s5 = ssub.s32 1, %s3
  %s6 = scalar_select 0, %s5, %s3
  $region1: #{tpu_custom_call.1} parent=0
    #allocation2 [shape = 'u8[4096]{0}', space=vmem, size = 0x1000, scoped, tag = 'output window, operand 0, single buffered']
    #allocation3 [shape = 's32[1]{0}', space=sflag, size = 0x4, scoped, tag = 'scoped memory for tpu_custom_call.1']
    %7 = vsyncpa [#allocation3], 0
    // Predicated region
    $region2: #{tpu_custom_call.1} parent=1 // pred_check
      _
    $region3: #{tpu_custom_call.1} parent=1 // pred_check_branch
      %9 = sbr.rel (0) target = $region5
    $region4: #{tpu_custom_call.1} parent=1 // pred_region
      _
    $region5: #{tpu_custom_call.1} parent=1 // pred_fallthru
      _
    // Predicated region
    $region6: #{tpu_custom_call.1} parent=1 // pred_check
      _
    $region7: #{tpu_custom_call.1} parent=1 // pred_check_branch
      %11 = sbr.rel (0) target = $region9
    $region8: #{tpu_custom_call.1} parent=1 // pred_region
      _
    $region9: #{tpu_custom_call.1} parent=1 // pred_fallthru
      _
    %v12 = vld [vmem:[%s0] sm:$0xff]
    %v13 = vld [vmem:[%s0 + $0x8] sm:$0xff]
    %v14 = vld [vmem:[%s1] sm:$0xff]
    %v15 = vld [vmem:[%s1 + $0x8] sm:$0xff]
    %v16 = vld [vmem:[%s1 + $0x10] sm:$0xff]
    %v17 = vld [vmem:[%s1 + $0x18] sm:$0xff]
    %v18 = vld [vmem:[%s1 + $0x20] sm:$0xff]
    %v19 = vld [vmem:[%s1 + $0x28] sm:$0xff]
    %v20 = vld [vmem:[%s1 + $0x30] sm:$0xff]
    %v21 = vld [vmem:[%s1 + $0x38] sm:$0xff]
    %v22 = vld [vmem:[%s1 + $0x40] sm:$0xff]
    %v23 = vld [vmem:[%s1 + $0x48] sm:$0xff]
    %v24 = vld [vmem:[%s1 + $0x50] sm:$0xff]
    %v25 = vld [vmem:[%s1 + $0x58] sm:$0xff]
    %v26 = vld [vmem:[%s1 + $0x60] sm:$0xff]
    %v27 = vld [vmem:[%s1 + $0x68] sm:$0xff]
    %v28 = vld [vmem:[%s1 + $0x70] sm:$0xff]
    %v29 = vld [vmem:[%s1 + $0x78] sm:$0xff]
    %v30 = vld [vmem:[%s1 + $0x80] sm:$0xff]
    %v31 = vld [vmem:[%s1 + $0x88] sm:$0xff]
    %v32 = vld [vmem:[%s1 + $0x90] sm:$0xff]
    %v33 = vld [vmem:[%s1 + $0x98] sm:$0xff]
    %v34 = vld [vmem:[%s1 + $0xa0] sm:$0xff]
    %v35 = vld [vmem:[%s1 + $0xa8] sm:$0xff]
    %v36 = vld [vmem:[%s1 + $0xb0] sm:$0xff]
    %v37 = vld [vmem:[%s1 + $0xb8] sm:$0xff]
    %v38 = vld [vmem:[%s1 + $0xc0] sm:$0xff]
    %v39 = vld [vmem:[%s1 + $0xc8] sm:$0xff]
    %v40 = vld [vmem:[%s1 + $0xd0] sm:$0xff]
    %v41 = vld [vmem:[%s1 + $0xd8] sm:$0xff]
    %v42 = vld [vmem:[%s1 + $0xe0] sm:$0xff]
    %v43 = vld [vmem:[%s1 + $0xe8] sm:$0xff]
    %v44 = vld [vmem:[%s1 + $0xf0] sm:$0xff]
    %v45 = vld [vmem:[%s1 + $0xf8] sm:$0xff]
    %46 = vmatprep.subr.mxu0 0.0
    %47 = vmatpush1.msra.mxu0 %v14
    %48 = vmatprep.subr.mxu0 0.0
    %49 = vmatpush1.msra.mxu0 %v15
    %50 = vmatprep.subr.mxu0 0.0
    %51 = vmatpush1.msra.mxu0 %v16
    %52 = vmatprep.subr.mxu0 0.0
    %53 = vmatpush1.msra.mxu0 %v17
    %54 = vmatprep.subr.mxu0 0.0
    %55 = vmatpush1.msra.mxu0 %v18
    %56 = vmatprep.subr.mxu0 0.0
    %57 = vmatpush1.msra.mxu0 %v19
    %58 = vmatprep.subr.mxu0 0.0
    %59 = vmatpush1.msra.mxu0 %v20
    %60 = vmatprep.subr.mxu0 0.0
    %61 = vmatpush1.msra.mxu0 %v21
    %62 = vmatprep.subr.mxu0 0.0
    %63 = vmatpush1.msra.mxu0 %v22
    %64 = vmatprep.subr.mxu0 0.0
    %65 = vmatpush1.msra.mxu0 %v23
    %66 = vmatprep.subr.mxu0 0.0
    %67 = vmatpush1.msra.mxu0 %v24
    %68 = vmatprep.subr.mxu0 0.0
    %69 = vmatpush1.msra.mxu0 %v25
    %70 = vmatprep.subr.mxu0 0.0
    %71 = vmatpush1.msra.mxu0 %v26
    %72 = vmatprep.subr.mxu0 0.0
    %73 = vmatpush1.msra.mxu0 %v27
    %74 = vmatprep.subr.mxu0 0.0
    %75 = vmatpush1.msra.mxu0 %v28
    %76 = vmatprep.subr.mxu0 0.0
    %77 = vmatpush1.msra.mxu0 %v29
    %78 = vmatprep.subr.mxu0 0.0
    %79 = vmatpush1.msra.mxu0 %v30
    %80 = vmatprep.subr.mxu0 0.0
    %81 = vmatpush1.msra.mxu0 %v31
    %82 = vmatprep.subr.mxu0 0.0
    %83 = vmatpush1.msra.mxu0 %v32
    %84 = vmatprep.subr.mxu0 0.0
    %85 = vmatpush1.msra.mxu0 %v33
    %86 = vmatprep.subr.mxu0 0.0
    %87 = vmatpush1.msra.mxu0 %v34
    %88 = vmatprep.subr.mxu0 0.0
    %89 = vmatpush1.msra.mxu0 %v35
    %90 = vmatprep.subr.mxu0 0.0
    %91 = vmatpush1.msra.mxu0 %v36
    %92 = vmatprep.subr.mxu0 0.0
    %93 = vmatpush1.msra.mxu0 %v37
    %94 = vmatprep.subr.mxu0 0.0
    %95 = vmatpush1.msra.mxu0 %v38
    %96 = vmatprep.subr.mxu0 0.0
    %97 = vmatpush1.msra.mxu0 %v39
    %98 = vmatprep.subr.mxu0 0.0
    %99 = vmatpush1.msra.mxu0 %v40
    %100 = vmatprep.subr.mxu0 0.0
    %101 = vmatpush1.msra.mxu0 %v41
    %102 = vmatprep.subr.mxu0 0.0
    %103 = vmatpush1.msra.mxu0 %v42
    %104 = vmatprep.subr.mxu0 0.0
    %105 = vmatpush1.msra.mxu0 %v43
    %106 = vmatprep.subr.mxu0 0.0
    %107 = vmatpush1.msra.mxu0 %v44
    %108 = vmatprep.subr.mxu0 0.0
    %109 = vmatpush1.msra.mxu0 %v45
    %110 = vmatprep.mubr.f32.mxu0 %v13
    %111 = vmatmul.mubr.f32.gmra.mrb[0].mxu0 %v12
    %v112 = vpop.f32.mrb[0].mxu0
    %v113 = vadd.f32 0.0, %v112
    %v114 = vpop.f32.mrb[0].mxu0
    %115 = vdwg.mxu0
    %v116 = vmul.f32 %v113, 0.0625
    %vm117 = vcmask 130048
    %118 = vst.msk [vmem:[#allocation2] sm:$0xff] %vm117, %v116
    // Predicated region
    $region10: #{tpu_custom_call.1} parent=1 // pred_check
      _
    $region11: #{tpu_custom_call.1} parent=1 // pred_check_branch
      %120 = sbr.rel (0) target = $region13
    $region12: #{tpu_custom_call.1} parent=1 // pred_region
      %s122 = ssub.s32 128, 128
      %123 = vsyncadd [#allocation3], %s122
      %s125 = sshll.u32 [#allocation2], 4
      %s126 = int_to_ptr.vmem [resolvable:$true] %s125
      %128 = dma.vmem_to_hbm [thread:$0]  %s126, 128, %s2, [#allocation3]
    $region13: #{tpu_custom_call.1} parent=1 // pred_fallthru
      _
    // Predicated region
    $region14: #{tpu_custom_call.1} parent=1 // pred_check
      _
    $region15: #{tpu_custom_call.1} parent=1 // pred_check_branch
      %130 = sbr.rel (0) target = $region17
    $region16: #{tpu_custom_call.1} parent=1 // pred_region
      %131 = dma.done [#allocation3], 128
    $region17: #{tpu_custom_call.1} parent=1 // pred_fallthru
      _
    %132 = vsyncpa [#allocation3], 1

</llo_original>
